<compile_context>
chip_gen: v5e
topology: v5e:2x2
jax: 0.10.0
libtpu: 0.0.40
codegen_flags: <defaults>
</compile_context>

<pallas_src>
import functools

import jax
import jax.numpy as jnp
from jax.experimental import pallas as pl
from jax.experimental.pallas import tpu as pltpu

LN_EPS = 1e-5


def _round_up(x, m):
    return ((x + m - 1) // m) * m


def transition_kernel(src_ref, ln_w_ref, ln_b_ref, w1_ref, b1_ref, w2_ref,
                      b2_ref, out_ref, *, d_actual):
    # One (block_rows, d_pad) tile of src per grid step; params are resident.
    x = src_ref[...].astype(jnp.float32)

    # LayerNorm, single-pass statistics.  Padded feature lanes (if any) hold
    # zeros, so both sums are exact w.r.t. the real feature width d_actual.
    inv_d = jnp.float32(1.0 / d_actual)
    mu = jnp.sum(x, axis=-1, keepdims=True) * inv_d
    var = jnp.sum(x * x, axis=-1, keepdims=True) * inv_d - mu * mu
    var = jnp.maximum(var, 0.0)               # guard tiny negative cancellation
    xn = (x - mu) * jax.lax.rsqrt(var + LN_EPS)
    xn = xn * ln_w_ref[...] + ln_b_ref[...]   # padded lanes stay 0 (params 0)

    # Linear1 + ReLU  (d -> n*d): bf16 operands -> native MXU rate, f32 acc.
    h = jnp.dot(xn.astype(jnp.bfloat16), w1_ref[...],
                preferred_element_type=jnp.float32)
    h = jnp.maximum(h + b1_ref[...], 0.0)

    # Linear2  (n*d -> d)
    y = jnp.dot(h.astype(jnp.bfloat16), w2_ref[...],
                preferred_element_type=jnp.float32)
    y = y + b2_ref[...]

    # Residual add: re-read the src tile from VMEM (cheap vld) instead of
    # keeping the f32 x alive across both GEMMs.
    out_ref[...] = (src_ref[...].astype(jnp.float32) + y).astype(out_ref.dtype)


def _vmem_capacity_bytes():
    try:
        return int(pltpu.get_tpu_info().vmem_capacity_bytes)
    except Exception:
        return 64 * 1024 * 1024   # conservative: v7x per-core VMEM


def _pick_block_rows(rows, d_pad, hidden_pad, itemsize, tile_budget_bytes):
    rows8 = _round_up(max(rows, 1), 8)
    # Per-row VMEM cost: double-buffered src + out tiles in the I/O dtype plus
    # the f32 LN / hidden intermediates kept live by the compiler.
    per_row = 4 * d_pad * itemsize + 4 * (2 * d_pad + 2 * hidden_pad)
    # Large tiles amortize the ~0.35 us/step grid overhead; cap higher when
    # the feature width is small (v6e/v5e have 128 MiB VMEM to spend).
    cap = 2048 if d_pad <= 256 else 1024
    bm = min(cap, rows8, max(256, _round_up(pl.cdiv(rows8, 8), 8)))
    # Guarantee >= 2 grid steps for non-tiny inputs so ("parallel",) can use
    # both TensorCores on v7x (cost on single-TC chips is one extra step).
    if rows8 >= 16:
        bm = min(bm, _round_up(pl.cdiv(rows8, 2), 8))
    bm = _round_up(bm, 8)
    while bm > 8 and bm * per_row > tile_budget_bytes:
        bm = _round_up(bm // 2, 8)
    return max(8, min(bm, rows8))


@functools.partial(jax.jit, static_argnames=("block_rows",))
def transition_pallas(src, ln_w, ln_b, w1, b1, w2, b2, *, block_rows=None):
    orig_shape = src.shape
    d = orig_shape[-1]
    rows = 1
    for s in orig_shape[:-1]:
        rows *= s
    hidden = w1.shape[1]

    # Lane-dense sizes (multiples of 128 on feature / hidden axes).
    d_pad = _round_up(d, 128)
    hidden_pad = _round_up(hidden, 128)
    pad_d = d_pad - d
    pad_h = hidden_pad - hidden

    itemsize = jnp.dtype(src.dtype).itemsize
    vmem_cap = _vmem_capacity_bytes()
    # bf16 weights, single-buffered (pipeline_mode=Buffered(1)).
    weight_bytes = 2 * 2 * d_pad * hidden_pad
    tile_budget = max(int(0.7 * vmem_cap) - weight_bytes, 1 << 20)
    if block_rows is None:
        block_rows = _pick_block_rows(rows, d_pad, hidden_pad, itemsize,
                                      tile_budget)
    grid = (pl.cdiv(rows, block_rows),)

    # Fast path (common Transition case, d % 128 == 0): src is only reshaped,
    # no pad and no output slice -> no extra HBM pass over the activations.
    src2d = src.reshape(rows, d)
    if pad_d:
        src2d = jnp.pad(src2d, ((0, 0), (0, pad_d)))

    # Parameters are tiny; pad unconditionally (no-op when pads are zero).
    ln_w_p = jnp.pad(ln_w.reshape(1, d).astype(jnp.float32),
                     ((0, 0), (0, pad_d)))
    ln_b_p = jnp.pad(ln_b.reshape(1, d).astype(jnp.float32),
                     ((0, 0), (0, pad_d)))
    w1_p = jnp.pad(w1, ((0, pad_d), (0, pad_h))).astype(jnp.bfloat16)
    b1_p = jnp.pad(b1.reshape(1, hidden).astype(jnp.float32),
                   ((0, 0), (0, pad_h)))
    w2_p = jnp.pad(w2, ((0, pad_h), (0, pad_d))).astype(jnp.bfloat16)
    b2_p = jnp.pad(b2.reshape(1, d).astype(jnp.float32),
                   ((0, 0), (0, pad_d)))

    kernel = functools.partial(transition_kernel, d_actual=d)

    flops = 4 * rows * d_pad * hidden_pad                 # two GEMMs
    bytes_accessed = (2 * rows * d_pad * itemsize         # src in + out
                      + 2 * 2 * d_pad * hidden_pad        # bf16 W1 + W2
                      + 4 * (4 * d_pad + hidden_pad))     # LN params + biases

    def param_spec(shape):
        # Grid-invariant operand: constant index_map, never re-DMA'd ->
        # single-buffer it to halve its resident VMEM footprint.
        return pl.BlockSpec(shape, lambda i: (0, 0),
                            pipeline_mode=pl.Buffered(buffer_count=1))

    out = pl.pallas_call(
        kernel,
        out_shape=jax.ShapeDtypeStruct((rows, d_pad), src.dtype),
        grid_spec=pltpu.PrefetchScalarGridSpec(
            num_scalar_prefetch=0,
            grid=grid,
            in_specs=[
                pl.BlockSpec((block_rows, d_pad), lambda i: (i, 0)),   # src
                param_spec((1, d_pad)),                                # ln w
                param_spec((1, d_pad)),                                # ln b
                param_spec((d_pad, hidden_pad)),                       # W1
                param_spec((1, hidden_pad)),                           # b1
                param_spec((hidden_pad, d_pad)),                       # W2
                param_spec((1, d_pad)),                                # b2
            ],
            out_specs=pl.BlockSpec((block_rows, d_pad), lambda i: (i, 0)),
        ),
        compiler_params=pltpu.CompilerParams(
            dimension_semantics=("parallel",),
            vmem_limit_bytes=int(0.8 * vmem_cap),
        ),
        cost_estimate=pl.CostEstimate(
            flops=flops, transcendentals=rows,
            bytes_accessed=bytes_accessed),
    )(src2d, ln_w_p, ln_b_p, w1_p, b1_p, w2_p, b2_p)

    if pad_d:
        out = out[:, :d]
    return out.reshape(orig_shape)


def transition_ref(src, ln_w, ln_b, w1, b1, w2, b2,
                   matmul_dtype=jnp.float32):
    x = src.astype(jnp.float32)
    mu = jnp.mean(x, axis=-1, keepdims=True)
    var = jnp.mean(jnp.square(x - mu), axis=-1, keepdims=True)
    xn = (x - mu) * jax.lax.rsqrt(var + LN_EPS)
    xn = xn * ln_w.reshape(-1) + ln_b.reshape(-1)
    h = jnp.dot(xn.astype(matmul_dtype), w1.astype(matmul_dtype),
                preferred_element_type=jnp.float32) + b1.reshape(-1)
    h = jnp.maximum(h, 0.0)
    y = jnp.dot(h.astype(matmul_dtype), w2.astype(matmul_dtype),
                preferred_element_type=jnp.float32) + b2.reshape(-1)
    return (x + y).astype(src.dtype)


def glorot_uniform(key, fan_in, fan_out, gain=1.0):
    limit = gain * jnp.sqrt(6.0 / (fan_in + fan_out))
    return jax.random.uniform(key, (fan_in, fan_out), jnp.float32,
                              minval=-limit, maxval=limit)


if __name__ == "__main__":
    def run_case(B, S, d, n, key, nonzero_w2):
        hidden = n * d
        k_src, k_w1, k_w2 = jax.random.split(key, 3)
        src = jax.random.normal(k_src, (B, S, d), jnp.float32)

        # Parameters per Transition.__init__:
        ln_w = jnp.ones((1, d), jnp.float32)              # LayerNorm weight
        ln_b = jnp.zeros((1, d), jnp.float32)             # LayerNorm bias
        w1 = glorot_uniform(k_w1, d, hidden, gain=2.0)    # linear1: 'relu'
        b1 = jnp.zeros((1, hidden), jnp.float32)
        if nonzero_w2:
            w2 = glorot_uniform(k_w2, hidden, d, gain=1.0)
            b2 = jnp.full((1, d), 0.1, jnp.float32)
        else:
            w2 = jnp.zeros((hidden, d), jnp.float32)      # linear2: 'zeros'
            b2 = jnp.zeros((1, d), jnp.float32)

        out = jax.block_until_ready(
            transition_pallas(src, ln_w, ln_b, w1, b1, w2, b2))
        # Tight check vs. a reference feeding the matmuls in bf16 (like the
        # kernel), loose fidelity check vs. the full-f32 module math.
        ref_bf16 = transition_ref(src, ln_w, ln_b, w1, b1, w2, b2,
                                  matmul_dtype=jnp.bfloat16)
        ref_f32 = transition_ref(src, ln_w, ln_b, w1, b1, w2, b2)
        assert jnp.allclose(out, ref_bf16, atol=1e-2, rtol=1e-2), \
            f"bf16-path mismatch (d={d}, n={n})"
        assert jnp.allclose(out, ref_f32, atol=5e-2, rtol=5e-2), \
            f"f32 fidelity mismatch (d={d}, n={n})"

    key = jax.random.PRNGKey(0)
    k1, k2, k3 = jax.random.split(key, 3)

    # 1) Module-default init (linear2 zero-initialized): op == exact residual.
    run_case(2, 8, 32, 4, k1, nonzero_w2=False)
    # 2) Padded path (d % 128 != 0) with a non-trivial second projection.
    run_case(2, 8, 32, 4, k2, nonzero_w2=True)
    # 3) Lane-dense fast path (d % 128 == 0): no wrapper pad / no output slice.
    run_case(2, 8, 128, 2, k3, nonzero_w2=True)

    print("KERNEL_OK")
</pallas_src>

<mosaic_0001>
module attributes {stable_mosaic.version = 11 : i64} {
  func.func @transition_kernel(%arg0: i32, %arg1: memref<8x128xf32, #tpu.memory_space<vmem>>, %arg2: memref<1x128xf32, #tpu.memory_space<vmem>>, %arg3: memref<1x128xf32, #tpu.memory_space<vmem>>, %arg4: memref<128x128xbf16, #tpu.memory_space<vmem>>, %arg5: memref<1x128xf32, #tpu.memory_space<vmem>>, %arg6: memref<128x128xbf16, #tpu.memory_space<vmem>>, %arg7: memref<1x128xf32, #tpu.memory_space<vmem>>, %arg8: memref<8x128xf32, #tpu.memory_space<vmem>>) attributes {dimension_semantics = [#tpu.dimension_semantics<parallel>], iteration_bounds = array<i64: 2>, scalar_prefetch = 0 : i64, scratch_operands = 0 : i64, tpu.core_type = #tpu.core_type<tc>, window_params = [{transform_indices = @transform_0, window_bounds = array<i64: 8, 128>}, {pipeline_mode = #tpu.pipeline_mode<synchronous>, transform_indices = @transform_1, window_bounds = array<i64: 1, 128>}, {pipeline_mode = #tpu.pipeline_mode<synchronous>, transform_indices = @transform_2, window_bounds = array<i64: 1, 128>}, {pipeline_mode = #tpu.pipeline_mode<synchronous>, transform_indices = @transform_3, window_bounds = array<i64: 128, 128>}, {pipeline_mode = #tpu.pipeline_mode<synchronous>, transform_indices = @transform_4, window_bounds = array<i64: 1, 128>}, {pipeline_mode = #tpu.pipeline_mode<synchronous>, transform_indices = @transform_5, window_bounds = array<i64: 128, 128>}, {pipeline_mode = #tpu.pipeline_mode<synchronous>, transform_indices = @transform_6, window_bounds = array<i64: 1, 128>}, {transform_indices = @transform_7, window_bounds = array<i64: 8, 128>}]} {
    %c0 = arith.constant 0 : index
    %c0_0 = arith.constant 0 : index
    %0 = vector.load %arg1[%c0, %c0_0] : memref<8x128xf32, #tpu.memory_space<vmem>>, vector<8x128xf32>
    %cst = arith.constant dense<0.000000e+00> : vector<8xf32>
    %1 = vector.multi_reduction <add>, %0, %cst [1] : vector<8x128xf32> to vector<8xf32>
    %2 = vector.shape_cast %1 : vector<8xf32> to vector<8x1xf32>
    %cst_1 = arith.constant 3.125000e-02 : f32
    %3 = vector.broadcast %cst_1 : f32 to vector<8x1xf32>
    %4 = arith.mulf %2, %3 : vector<8x1xf32>
    %5 = arith.mulf %0, %0 : vector<8x128xf32>
    %cst_2 = arith.constant dense<0.000000e+00> : vector<8xf32>
    %6 = vector.multi_reduction <add>, %5, %cst_2 [1] : vector<8x128xf32> to vector<8xf32>
    %7 = vector.shape_cast %6 : vector<8xf32> to vector<8x1xf32>
    %cst_3 = arith.constant 3.125000e-02 : f32
    %8 = vector.broadcast %cst_3 : f32 to vector<8x1xf32>
    %9 = arith.mulf %7, %8 : vector<8x1xf32>
    %10 = arith.mulf %4, %4 : vector<8x1xf32>
    %11 = arith.subf %9, %10 : vector<8x1xf32>
    %cst_4 = arith.constant 0.000000e+00 : f32
    %12 = vector.broadcast %cst_4 : f32 to vector<8x1xf32>
    %13 = arith.maximumf %11, %12 : vector<8x1xf32>
    %14 = vector.broadcast %4 : vector<8x1xf32> to vector<8x128xf32>
    %15 = arith.subf %0, %14 : vector<8x128xf32>
    %cst_5 = arith.constant 9.99999974E-6 : f32
    %16 = vector.broadcast %cst_5 : f32 to vector<8x1xf32>
    %17 = arith.addf %13, %16 : vector<8x1xf32>
    %18 = math.rsqrt %17 : vector<8x1xf32>
    %19 = vector.broadcast %18 : vector<8x1xf32> to vector<8x128xf32>
    %20 = arith.mulf %15, %19 : vector<8x128xf32>
    %c0_6 = arith.constant 0 : index
    %c0_7 = arith.constant 0 : index
    %21 = vector.load %arg2[%c0_6, %c0_7] : memref<1x128xf32, #tpu.memory_space<vmem>>, vector<1x128xf32>
    %22 = vector.broadcast %21 : vector<1x128xf32> to vector<8x128xf32>
    %23 = arith.mulf %20, %22 : vector<8x128xf32>
    %c0_8 = arith.constant 0 : index
    %c0_9 = arith.constant 0 : index
    %24 = vector.load %arg3[%c0_8, %c0_9] : memref<1x128xf32, #tpu.memory_space<vmem>>, vector<1x128xf32>
    %25 = vector.broadcast %24 : vector<1x128xf32> to vector<8x128xf32>
    %26 = arith.addf %23, %25 : vector<8x128xf32>
    %27 = arith.truncf %26 : vector<8x128xf32> to vector<8x128xbf16>
    %c0_10 = arith.constant 0 : index
    %c0_11 = arith.constant 0 : index
    %28 = vector.load %arg4[%c0_10, %c0_11] : memref<128x128xbf16, #tpu.memory_space<vmem>>, vector<128x128xbf16>
    %cst_12 = arith.constant dense<0.000000e+00> : vector<8x128xf32>
    %29 = tpu.matmul %27, %28, %cst_12 {dimension_numbers = #tpu.dot_dimension_numbers<[1], [0], [0], [1], [0, 0, 1, 1], [], []>} : vector<8x128xbf16>, vector<128x128xbf16>, vector<8x128xf32> -> vector<8x128xf32>
    %c0_13 = arith.constant 0 : index
    %c0_14 = arith.constant 0 : index
    %30 = vector.load %arg5[%c0_13, %c0_14] : memref<1x128xf32, #tpu.memory_space<vmem>>, vector<1x128xf32>
    %31 = vector.broadcast %30 : vector<1x128xf32> to vector<8x128xf32>
    %32 = arith.addf %29, %31 : vector<8x128xf32>
    %cst_15 = arith.constant 0.000000e+00 : f32
    %33 = vector.broadcast %cst_15 : f32 to vector<8x128xf32>
    %34 = arith.maximumf %32, %33 : vector<8x128xf32>
    %35 = arith.truncf %34 : vector<8x128xf32> to vector<8x128xbf16>
    %c0_16 = arith.constant 0 : index
    %c0_17 = arith.constant 0 : index
    %36 = vector.load %arg6[%c0_16, %c0_17] : memref<128x128xbf16, #tpu.memory_space<vmem>>, vector<128x128xbf16>
    %cst_18 = arith.constant dense<0.000000e+00> : vector<8x128xf32>
    %37 = tpu.matmul %35, %36, %cst_18 {dimension_numbers = #tpu.dot_dimension_numbers<[1], [0], [0], [1], [0, 0, 1, 1], [], []>} : vector<8x128xbf16>, vector<128x128xbf16>, vector<8x128xf32> -> vector<8x128xf32>
    %c0_19 = arith.constant 0 : index
    %c0_20 = arith.constant 0 : index
    %38 = vector.load %arg7[%c0_19, %c0_20] : memref<1x128xf32, #tpu.memory_space<vmem>>, vector<1x128xf32>
    %39 = vector.broadcast %38 : vector<1x128xf32> to vector<8x128xf32>
    %40 = arith.addf %37, %39 : vector<8x128xf32>
    %c0_21 = arith.constant 0 : index
    %c0_22 = arith.constant 0 : index
    %41 = vector.load %arg1[%c0_21, %c0_22] : memref<8x128xf32, #tpu.memory_space<vmem>>, vector<8x128xf32>
    %42 = arith.addf %41, %40 : vector<8x128xf32>
    %c0_23 = arith.constant 0 : index
    %c0_24 = arith.constant 0 : index
    %43 = vector.load %arg8[%c0_23, %c0_24] : memref<8x128xf32, #tpu.memory_space<vmem>>, vector<8x128xf32>
    tpu.vector_store %arg8[%c0_23, %c0_24], %42 {strides = array<i32>} : memref<8x128xf32, #tpu.memory_space<vmem>>, vector<8x128xf32>,
    return
  }
  func.func @transform_0(%arg0: i32) -> (i32, i32) {
    %c0_i32 = arith.constant 0 : i32
    %c0_i32_0 = arith.constant 0 : i32
    return %arg0, %c0_i32 : i32, i32
  }
  func.func @transform_1(%arg0: i32) -> (i32, i32) {
    %c0_i32 = arith.constant 0 : i32
    %c0_i32_0 = arith.constant 0 : i32
    %c0_i32_1 = arith.constant 0 : i32
    return %c0_i32, %c0_i32_0 : i32, i32
  }
  func.func @transform_2(%arg0: i32) -> (i32, i32) {
    %c0_i32 = arith.constant 0 : i32
    %c0_i32_0 = arith.constant 0 : i32
    %c0_i32_1 = arith.constant 0 : i32
    return %c0_i32, %c0_i32_0 : i32, i32
  }
  func.func @transform_3(%arg0: i32) -> (i32, i32) {
    %c0_i32 = arith.constant 0 : i32
    %c0_i32_0 = arith.constant 0 : i32
    %c0_i32_1 = arith.constant 0 : i32
    return %c0_i32, %c0_i32_0 : i32, i32
  }
  func.func @transform_4(%arg0: i32) -> (i32, i32) {
    %c0_i32 = arith.constant 0 : i32
    %c0_i32_0 = arith.constant 0 : i32
    %c0_i32_1 = arith.constant 0 : i32
    return %c0_i32, %c0_i32_0 : i32, i32
  }
  func.func @transform_5(%arg0: i32) -> (i32, i32) {
    %c0_i32 = arith.constant 0 : i32
    %c0_i32_0 = arith.constant 0 : i32
    %c0_i32_1 = arith.constant 0 : i32
    return %c0_i32, %c0_i32_0 : i32, i32
  }
  func.func @transform_6(%arg0: i32) -> (i32, i32) {
    %c0_i32 = arith.constant 0 : i32
    %c0_i32_0 = arith.constant 0 : i32
    %c0_i32_1 = arith.constant 0 : i32
    return %c0_i32, %c0_i32_0 : i32, i32
  }
  func.func @transform_7(%arg0: i32) -> (i32, i32) {
    %c0_i32 = arith.constant 0 : i32
    %c0_i32_0 = arith.constant 0 : i32
    return %arg0, %c0_i32 : i32, i32
  }
}

</mosaic_0001>

<llo_original>
// kernel: transition_pallas.1
$region0: #{transition_pallas.1}
  #allocation0 [shape = 'u32[]', space=smem, size = 0x4, offset = 0x4, fixed_abs, tag = 'smem constant byte address 0x4 - core index']
  #allocation1 [shape = 'u32[72,128]{1,0:T(1,128)}', space=vmem, size = 0x9000, scoped, tag = 'internal scratch']
  %s0 = inlined_call_operand.vmem [shape: f32[16,128], index: 0, kind: input, shape index: {}]
  %s1 = inlined_call_operand.vmem [shape: f32[1,128], index: 1, kind: input, shape index: {}]
  %s2 = inlined_call_operand.vmem [shape: f32[1,128], index: 2, kind: input, shape index: {}]
  %s3 = inlined_call_operand.vmem [shape: bf16[128,128], index: 3, kind: input, shape index: {}]
  %s4 = inlined_call_operand.vmem [shape: f32[1,128], index: 4, kind: input, shape index: {}]
  %s5 = inlined_call_operand.vmem [shape: bf16[128,128], index: 5, kind: input, shape index: {}]
  %s6 = inlined_call_operand.vmem [shape: f32[1,128], index: 6, kind: input, shape index: {}]
  %s7 = inlined_call_operand.vmem [shape: f32[16,128], index: 7, kind: output, shape index: {}]
  %s8 = sld [smem:[#allocation0]]
  $region61: #{transition_pallas.1} parent=0
    _
  %s10 = ssub.s32 1, %s8
  %s11 = scalar_select 0, %s10, %s8
  loop: start=0, step=1, limit=4
  $region2: #{transition_pallas.1} parent=0 // loop_pre_header
    _
  $region3: #{transition_pallas.1} parent=0 // loop_header
    %s13 = sphi 0, %s17
    %p14 = scmp.ge.s32.totalorder %s13, 4
    %s23 = sphi 0, %s25
    %s26 = sphi 0, %s23
    %s27 = sphi 0, %s26
    %s43 = sphi 0, %s27
    %s47 = sphi 0, %s47
    %s49 = sphi 0, %s47
    %s50 = sphi 0, %s49
    %s64 = sphi 0, %s50
    %s68 = sphi 0, %s68
    %s70 = sphi 0, %s68
    %s71 = sphi 0, %s70
    %s85 = sphi 0, %s71
    %s89 = sphi 0, %s89
    %s91 = sphi 0, %s89
    %s92 = sphi 0, %s91
    %s106 = sphi 0, %s92
    %s110 = sphi 0, %s110
    %s112 = sphi 0, %s110
    %s113 = sphi 0, %s112
    %s127 = sphi 0, %s113
    %s131 = sphi 0, %s131
    %s133 = sphi 0, %s131
    %s134 = sphi 0, %s133
    %s148 = sphi 0, %s134
    %s152 = sphi 0, %s152
    %s154 = sphi 0, %s152
    %s155 = sphi 0, %s154
    %s169 = sphi 0, %s155
    %s175 = sphi 0, %s177
    %s178 = sphi 0, %s175
    %s179 = sphi 0, %s178
    %s195 = sphi 0, %s179
  $region4: #{transition_pallas.1} parent=0 // loop_header_branch
    %16 = sbr.rel (%p14) target = $region8
  $region5: #{transition_pallas.1} parent=0 // loop_body
    %s18 = ssub.s32 %s13, 1
    %s19 = ssub.s32 %s13, 2
    %s20 = sadd.s32 %s13, 1
    %s21 = ssub.s32 %s13, %s20
    %p22 = scmp.eq.s32.totalorder %s21, 0
    %s24 = sadd.s32 %s23, 1
    %s25 = scalar_select %p22, %s23, %s24
    %p28 = pneg %p22
    %p29 = scmp.eq.s32.totalorder %s13, 1
    %p30 = por %p28, %p29
    %p31 = scmp.ne.s32.totalorder %s23, %s26
    %p32 = scmp.eq.s32.totalorder %s13, 0
    %p33 = por %p31, %p32
    %p34 = scmp.ne.s32.totalorder %s23, %s26
    %p35 = scmp.eq.s32.totalorder %s18, 1
    %p36 = por %p34, %p35
    %p37 = scmp.ne.s32.totalorder %s26, %s27
    %p38 = scmp.eq.s32.totalorder %s18, 0
    %p39 = por %p37, %p38
    %p40 = scmp.ne.s32.totalorder %s26, %s27
    %p41 = scmp.eq.s32.totalorder %s19, 1
    %p42 = por %p40, %p41
    %p44 = scmp.ne.s32.totalorder %s27, %s43
    %p45 = scmp.eq.s32.totalorder %s19, 0
    %p46 = por %p44, %p45
    %s48 = sadd.s32 %s47, 1
    %p51 = scmp.eq.s32.totalorder %s13, 1
    %p52 = scmp.ne.s32.totalorder %s47, %s49
    %p53 = scmp.eq.s32.totalorder %s13, 0
    %p54 = por %p52, %p53
    %p55 = scmp.ne.s32.totalorder %s47, %s49
    %p56 = scmp.eq.s32.totalorder %s18, 1
    %p57 = por %p55, %p56
    %p58 = scmp.ne.s32.totalorder %s49, %s50
    %p59 = scmp.eq.s32.totalorder %s18, 0
    %p60 = por %p58, %p59
    %p61 = scmp.ne.s32.totalorder %s49, %s50
    %p62 = scmp.eq.s32.totalorder %s19, 1
    %p63 = por %p61, %p62
    %p65 = scmp.ne.s32.totalorder %s50, %s64
    %p66 = scmp.eq.s32.totalorder %s19, 0
    %p67 = por %p65, %p66
    %s69 = sadd.s32 %s68, 1
    %p72 = scmp.eq.s32.totalorder %s13, 1
    %p73 = scmp.ne.s32.totalorder %s68, %s70
    %p74 = scmp.eq.s32.totalorder %s13, 0
    %p75 = por %p73, %p74
    %p76 = scmp.ne.s32.totalorder %s68, %s70
    %p77 = scmp.eq.s32.totalorder %s18, 1
    %p78 = por %p76, %p77
    %p79 = scmp.ne.s32.totalorder %s70, %s71
    %p80 = scmp.eq.s32.totalorder %s18, 0
    %p81 = por %p79, %p80
    %p82 = scmp.ne.s32.totalorder %s70, %s71
    %p83 = scmp.eq.s32.totalorder %s19, 1
    %p84 = por %p82, %p83
    %p86 = scmp.ne.s32.totalorder %s71, %s85
    %p87 = scmp.eq.s32.totalorder %s19, 0
    %p88 = por %p86, %p87
    %s90 = sadd.s32 %s89, 1
    %p93 = scmp.eq.s32.totalorder %s13, 1
    %p94 = scmp.ne.s32.totalorder %s89, %s91
    %p95 = scmp.eq.s32.totalorder %s13, 0
    %p96 = por %p94, %p95
    %p97 = scmp.ne.s32.totalorder %s89, %s91
    %p98 = scmp.eq.s32.totalorder %s18, 1
    %p99 = por %p97, %p98
    %p100 = scmp.ne.s32.totalorder %s91, %s92
    %p101 = scmp.eq.s32.totalorder %s18, 0
    %p102 = por %p100, %p101
    %p103 = scmp.ne.s32.totalorder %s91, %s92
    %p104 = scmp.eq.s32.totalorder %s19, 1
    %p105 = por %p103, %p104
    %p107 = scmp.ne.s32.totalorder %s92, %s106
    %p108 = scmp.eq.s32.totalorder %s19, 0
    %p109 = por %p107, %p108
    %s111 = sadd.s32 %s110, 1
    %p114 = scmp.eq.s32.totalorder %s13, 1
    %p115 = scmp.ne.s32.totalorder %s110, %s112
    %p116 = scmp.eq.s32.totalorder %s13, 0
    %p117 = por %p115, %p116
    %p118 = scmp.ne.s32.totalorder %s110, %s112
    %p119 = scmp.eq.s32.totalorder %s18, 1
    %p120 = por %p118, %p119
    %p121 = scmp.ne.s32.totalorder %s112, %s113
    %p122 = scmp.eq.s32.totalorder %s18, 0
    %p123 = por %p121, %p122
    %p124 = scmp.ne.s32.totalorder %s112, %s113
    %p125 = scmp.eq.s32.totalorder %s19, 1
    %p126 = por %p124, %p125
    %p128 = scmp.ne.s32.totalorder %s113, %s127
    %p129 = scmp.eq.s32.totalorder %s19, 0
    %p130 = por %p128, %p129
    %s132 = sadd.s32 %s131, 1
    %p135 = scmp.eq.s32.totalorder %s13, 1
    %p136 = scmp.ne.s32.totalorder %s131, %s133
    %p137 = scmp.eq.s32.totalorder %s13, 0
    %p138 = por %p136, %p137
    %p139 = scmp.ne.s32.totalorder %s131, %s133
    %p140 = scmp.eq.s32.totalorder %s18, 1
    %p141 = por %p139, %p140
    %p142 = scmp.ne.s32.totalorder %s133, %s134
    %p143 = scmp.eq.s32.totalorder %s18, 0
    %p144 = por %p142, %p143
    %p145 = scmp.ne.s32.totalorder %s133, %s134
    %p146 = scmp.eq.s32.totalorder %s19, 1
    %p147 = por %p145, %p146
    %p149 = scmp.ne.s32.totalorder %s134, %s148
    %p150 = scmp.eq.s32.totalorder %s19, 0
    %p151 = por %p149, %p150
    %s153 = sadd.s32 %s152, 1
    %p156 = scmp.eq.s32.totalorder %s13, 1
    %p157 = scmp.ne.s32.totalorder %s152, %s154
    %p158 = scmp.eq.s32.totalorder %s13, 0
    %p159 = por %p157, %p158
    %p160 = scmp.ne.s32.totalorder %s152, %s154
    %p161 = scmp.eq.s32.totalorder %s18, 1
    %p162 = por %p160, %p161
    %p163 = scmp.ne.s32.totalorder %s154, %s155
    %p164 = scmp.eq.s32.totalorder %s18, 0
    %p165 = por %p163, %p164
    %p166 = scmp.ne.s32.totalorder %s154, %s155
    %p167 = scmp.eq.s32.totalorder %s19, 1
    %p168 = por %p166, %p167
    %p170 = scmp.ne.s32.totalorder %s155, %s169
    %p171 = scmp.eq.s32.totalorder %s19, 0
    %p172 = por %p170, %p171
    %s173 = ssub.s32 %s13, %s20
    %p174 = scmp.eq.s32.totalorder %s173, 0
    %s176 = sadd.s32 %s175, 1
    %s177 = scalar_select %p174, %s175, %s176
    %p180 = pneg %p174
    %p181 = scmp.eq.s32.totalorder %s13, 1
    %p182 = por %p180, %p181
    %p183 = scmp.ne.s32.totalorder %s175, %s178
    %p184 = scmp.eq.s32.totalorder %s13, 0
    %p185 = por %p183, %p184
    %p186 = scmp.ne.s32.totalorder %s175, %s178
    %p187 = scmp.eq.s32.totalorder %s18, 1
    %p188 = por %p186, %p187
    %p189 = scmp.ne.s32.totalorder %s178, %s179
    %p190 = scmp.eq.s32.totalorder %s18, 0
    %p191 = por %p189, %p190
    %p192 = scmp.ne.s32.totalorder %s178, %s179
    %p193 = scmp.eq.s32.totalorder %s19, 1
    %p194 = por %p192, %p193
    %p196 = scmp.ne.s32.totalorder %s179, %s195
    %p197 = scmp.eq.s32.totalorder %s19, 0
    %p198 = por %p196, %p197
    %p199 = scmp.le.s32.totalorder 1, %s13
    %p200 = scmp.lt.s32.totalorder %s13, 3
    %p201 = pnand %p199, %p200
    %p202 = pneg %p201
    // Predicated region
    $region9: #{transition_pallas.1} parent=5 // pred_check
      _
    $region10: #{transition_pallas.1} parent=5 // pred_check_branch
      %204 = sbr.rel (%p201) target = $region12
    $region11: #{transition_pallas.1} parent=5 // pred_region
      %s205 = ssub.s32 %s13, 1
      // Predicated region
      $region13: #{transition_pallas.1} parent=11 // pred_check
        %p206 = pneg %p60
      $region14: #{transition_pallas.1} parent=11 // pred_check_branch
        %208 = sbr.rel (%p206) target = $region16
      $region15: #{transition_pallas.1} parent=11 // pred_region
        _
      $region16: #{transition_pallas.1} parent=11 // pred_fallthru
        _
      // Predicated region
      $region17: #{transition_pallas.1} parent=11 // pred_check
        %p209 = pneg %p81
      $region18: #{transition_pallas.1} parent=11 // pred_check_branch
        %211 = sbr.rel (%p209) target = $region20
      $region19: #{transition_pallas.1} parent=11 // pred_region
        _
      $region20: #{transition_pallas.1} parent=11 // pred_fallthru
        _
      // Predicated region
      $region21: #{transition_pallas.1} parent=11 // pred_check
        %p212 = pneg %p102
      $region22: #{transition_pallas.1} parent=11 // pred_check_branch
        %214 = sbr.rel (%p212) target = $region24
      $region23: #{transition_pallas.1} parent=11 // pred_region
        _
      $region24: #{transition_pallas.1} parent=11 // pred_fallthru
        _
      // Predicated region
      $region25: #{transition_pallas.1} parent=11 // pred_check
        %p215 = pneg %p123
      $region26: #{transition_pallas.1} parent=11 // pred_check_branch
        %217 = sbr.rel (%p215) target = $region28
      $region27: #{transition_pallas.1} parent=11 // pred_region
        _
      $region28: #{transition_pallas.1} parent=11 // pred_fallthru
        _
      // Predicated region
      $region29: #{transition_pallas.1} parent=11 // pred_check
        %p218 = pneg %p144
      $region30: #{transition_pallas.1} parent=11 // pred_check_branch
        %220 = sbr.rel (%p218) target = $region32
      $region31: #{transition_pallas.1} parent=11 // pred_region
        _
      $region32: #{transition_pallas.1} parent=11 // pred_fallthru
        _
      // Predicated region
      $region33: #{transition_pallas.1} parent=11 // pred_check
        %p221 = pneg %p165
      $region34: #{transition_pallas.1} parent=11 // pred_check_branch
        %223 = sbr.rel (%p221) target = $region36
      $region35: #{transition_pallas.1} parent=11 // pred_region
        _
      $region36: #{transition_pallas.1} parent=11 // pred_fallthru
        _
    $region12: #{transition_pallas.1} parent=5 // pred_fallthru
      _
    %p224 = scmp.lt.s32.totalorder %s13, 2
    // Predicated region
    $region37: #{transition_pallas.1} parent=5 // pred_check
      %p225 = pneg %p224
    $region38: #{transition_pallas.1} parent=5 // pred_check_branch
      %227 = sbr.rel (%p225) target = $region40
    $region39: #{transition_pallas.1} parent=5 // pred_region
      // Predicated region
      $region41: #{transition_pallas.1} parent=39 // pred_check
        %p228 = pneg %p33
      $region42: #{transition_pallas.1} parent=39 // pred_check_branch
        %230 = sbr.rel (%p228) target = $region44
      $region43: #{transition_pallas.1} parent=39 // pred_region
        %p231 = scmp.lt.s32.totalorder %s13, 1
        %s232 = scalar_select %p231, %s13, 1
        %s233 = smul.addr %s232, 8
        %s234 = scalar_lea.vmem %s0, %s233
      $region44: #{transition_pallas.1} parent=39 // pred_fallthru
        _
    $region40: #{transition_pallas.1} parent=5 // pred_fallthru
      _
    %p235 = scmp.le.s32.totalorder 1, %s13
    %p236 = scmp.lt.s32.totalorder %s13, 3
    %p237 = pnand %p235, %p236
    %p238 = pneg %p237
    // Predicated region
    $region45: #{transition_pallas.1} parent=5 // pred_check
      _
    $region46: #{transition_pallas.1} parent=5 // pred_check_branch
      %240 = sbr.rel (%p237) target = $region48
    $region47: #{transition_pallas.1} parent=5 // pred_region
      %s241 = ssub.s32 %s13, 1
      %p242 = scmp.lt.s32.totalorder %s18, 1
      %s243 = scalar_select %p242, %s18, 1
      %s244 = smul.addr %s243, 8
      %s245 = scalar_lea.vmem %s0, %s244
      %p246 = pneg %p39
      %p247 = pneg %p36
      %p248 = pneg %p60
      %p249 = pneg %p57
      %p250 = pneg %p81
      %p251 = pneg %p78
      %p252 = pneg %p102
      %p253 = pneg %p99
      %p254 = pneg %p123
      %p255 = pneg %p120
      %p256 = pneg %p144
      %p257 = pneg %p141
      %p258 = pneg %p165
      %p259 = pneg %p162
      %p260 = pneg %p191
      %p261 = pneg %p188
      %p262 = scmp.lt.s32.totalorder %s18, 1
      %s263 = scalar_select %p262, %s18, 1
      %s264 = smul.addr %s263, 8
      %s265 = scalar_lea.vmem %s7, %s264
      %p266 = scmp.lt.s32.totalorder %s18, 1
      %s267 = scalar_select %p266, %s18, 1
      %s268 = smul.addr %s267, 8
      %s269 = scalar_lea.vmem %s0, %s268
      %p270 = scmp.lt.s32.totalorder %s18, 1
      %s271 = scalar_select %p270, %s18, 1
      %s272 = smul.addr %s271, 8
      %s273 = scalar_lea.vmem %s7, %s272
      %v274 = vld [vmem:[%s269] sm:$0xff]
      %275 = vadd.xlane.f32.xlu0 %v274
      %v276 = vpop.xlane.xlu0 %275
      %v277 = vmul.f32 %v276, 0.03125
      %v278 = vmul.f32 %v274, %v274
      %279 = vadd.xlane.f32.xlu0 %v278
      %v280 = vpop.xlane.xlu0 %279
      %v281 = vmul.f32 %v280, 0.03125
      %v282 = vmul.f32 %v277, %v277
      %v283 = vsub.f32 %v281, %v282
      %v284 = vmax.f32 %v283, 0.0
      %v285 = vsub.f32 %v274, %v277
      %v286 = vadd.f32 %v284, 1e-05
      %v287 = vrsqrt.pop %v286
      %v288 = vmul.f32 %v287, %v286
      %v289 = vmul.f32 %v288, %v287
      %v290 = vmul.f32 0.5, %v289
      %v291 = vsub.f32 1.5, %v290
      %v292 = vmul.f32 %v287, %v291
      %vm293 = vweird.f32 %v286
      %vm294 = vweird.f32 %v287
      %vm295 = vmor %vm293, %vm294
      %v296 = vsel %vm295, %v287, %v292
      %v297 = vmul.f32 %v285, %v296
      %v298 = vld [vmem:[%s1] sm:$0x1]
      %v300 = vperm.slane %v298, 0
      %v302 = vmul.f32 %v297, %v300
      %v303 = vld [vmem:[%s2] sm:$0x1]
      %v305 = vperm.slane %v303, 0
      %v307 = vadd.f32 %v302, %v305
      %v308 = vpack.c.bf16 %v307, %v307
      %v309 = vld [vmem:[%s3] sm:$0xf]
      %v310 = vld [vmem:[%s3 + $0x4] sm:$0xf]
      %v311 = vld [vmem:[%s3 + $0x8] sm:$0xf]
      %v312 = vld [vmem:[%s3 + $0xc] sm:$0xf]
      %v313 = vld [vmem:[%s3 + $0x10] sm:$0xf]
      %v314 = vld [vmem:[%s3 + $0x14] sm:$0xf]
      %v315 = vld [vmem:[%s3 + $0x18] sm:$0xf]
      %v316 = vld [vmem:[%s3 + $0x1c] sm:$0xf]
      %v317 = vld [vmem:[%s3 + $0x20] sm:$0xf]
      %v318 = vld [vmem:[%s3 + $0x24] sm:$0xf]
      %v319 = vld [vmem:[%s3 + $0x28] sm:$0xf]
      %v320 = vld [vmem:[%s3 + $0x2c] sm:$0xf]
      %v321 = vld [vmem:[%s3 + $0x30] sm:$0xf]
      %v322 = vld [vmem:[%s3 + $0x34] sm:$0xf]
      %v323 = vld [vmem:[%s3 + $0x38] sm:$0xf]
      %v324 = vld [vmem:[%s3 + $0x3c] sm:$0xf]
      %v325 = vld [vmem:[%s4] sm:$0x1]
      %v327 = vperm.slane %v325, 0
      %v345 = vunpack.c.l.b16 %v309
      %v346 = vunpack.c.l.b16 %v310
      %v347 = vunpack.c.l.b16 %v311
      %v348 = vunpack.c.l.b16 %v312
      %v349 = vunpack.c.l.b16 %v313
      %v350 = vunpack.c.l.b16 %v314
      %v351 = vunpack.c.l.b16 %v315
      %v352 = vunpack.c.l.b16 %v316
      %v353 = vunpack.c.l.b16 %v317
      %v354 = vunpack.c.l.b16 %v318
      %v355 = vunpack.c.l.b16 %v319
      %v356 = vunpack.c.l.b16 %v320
      %v357 = vunpack.c.l.b16 %v321
      %v358 = vunpack.c.l.b16 %v322
      %v359 = vunpack.c.l.b16 %v323
      %v360 = vunpack.c.l.b16 %v324
      %v361 = vpack.c.b16 %v346, %v345
      %v362 = vpack.c.b16 %v348, %v347
      %v363 = vpack.c.b16 %v350, %v349
      %v364 = vpack.c.b16 %v352, %v351
      %v365 = vpack.c.b16 %v354, %v353
      %v366 = vpack.c.b16 %v356, %v355
      %v367 = vpack.c.b16 %v358, %v357
      %v368 = vpack.c.b16 %v360, %v359
      %377 = vmatpush.bf16.msra.mxu0 %v368
      %378 = vmatpush.bf16.msra.mxu0 %v367
      %379 = vmatpush.bf16.msra.mxu0 %v366
      %380 = vmatpush.bf16.msra.mxu0 %v365
      %381 = vmatpush.bf16.msra.mxu0 %v364
      %382 = vmatpush.bf16.msra.mxu0 %v363
      %383 = vmatpush.bf16.msra.mxu0 %v362
      %384 = vmatpush.bf16.msra.mxu0 %v361
      %385 = vmatmul.bf16.gmra.mxu0 %v308
      %v386 = vpop.f32.mrf.mxu0
      %v387 = vadd.f32 %v327, %v386
      %v388 = vpop.f32.mrf.mxu0
      %389 = vdwg.mxu0
      %v390 = vmax.f32 %v387, 0.0
      %v391 = vpack.c.bf16 %v390, %v390
      %v392 = vld [vmem:[%s5] sm:$0xf]
      %v393 = vld [vmem:[%s5 + $0x4] sm:$0xf]
      %v394 = vld [vmem:[%s5 + $0x8] sm:$0xf]
      %v395 = vld [vmem:[%s5 + $0xc] sm:$0xf]
      %v396 = vld [vmem:[%s5 + $0x10] sm:$0xf]
      %v397 = vld [vmem:[%s5 + $0x14] sm:$0xf]
      %v398 = vld [vmem:[%s5 + $0x18] sm:$0xf]
      %v399 = vld [vmem:[%s5 + $0x1c] sm:$0xf]
      %v400 = vld [vmem:[%s5 + $0x20] sm:$0xf]
      %v401 = vld [vmem:[%s5 + $0x24] sm:$0xf]
      %v402 = vld [vmem:[%s5 + $0x28] sm:$0xf]
      %v403 = vld [vmem:[%s5 + $0x2c] sm:$0xf]
      %v404 = vld [vmem:[%s5 + $0x30] sm:$0xf]
      %v405 = vld [vmem:[%s5 + $0x34] sm:$0xf]
      %v406 = vld [vmem:[%s5 + $0x38] sm:$0xf]
      %v407 = vld [vmem:[%s5 + $0x3c] sm:$0xf]
      %v408 = vld [vmem:[%s6] sm:$0x1]
      %v410 = vperm.slane %v408, 0
      %v428 = vunpack.c.l.b16 %v392
      %v429 = vunpack.c.l.b16 %v393
      %v430 = vunpack.c.l.b16 %v394
      %v431 = vunpack.c.l.b16 %v395
      %v432 = vunpack.c.l.b16 %v396
      %v433 = vunpack.c.l.b16 %v397
      %v434 = vunpack.c.l.b16 %v398
      %v435 = vunpack.c.l.b16 %v399
      %v436 = vunpack.c.l.b16 %v400
      %v437 = vunpack.c.l.b16 %v401
      %v438 = vunpack.c.l.b16 %v402
      %v439 = vunpack.c.l.b16 %v403
      %v440 = vunpack.c.l.b16 %v404
      %v441 = vunpack.c.l.b16 %v405
      %v442 = vunpack.c.l.b16 %v406
      %v443 = vunpack.c.l.b16 %v407
      %v444 = vpack.c.b16 %v429, %v428
      %v445 = vpack.c.b16 %v431, %v430
      %v446 = vpack.c.b16 %v433, %v432
      %v447 = vpack.c.b16 %v435, %v434
      %v448 = vpack.c.b16 %v437, %v436
      %v449 = vpack.c.b16 %v439, %v438
      %v450 = vpack.c.b16 %v441, %v440
      %v451 = vpack.c.b16 %v443, %v442
      %460 = vmatpush.bf16.msra.mxu0 %v451
      %461 = vmatpush.bf16.msra.mxu0 %v450
      %462 = vmatpush.bf16.msra.mxu0 %v449
      %463 = vmatpush.bf16.msra.mxu0 %v448
      %464 = vmatpush.bf16.msra.mxu0 %v447
      %465 = vmatpush.bf16.msra.mxu0 %v446
      %466 = vmatpush.bf16.msra.mxu0 %v445
      %467 = vmatpush.bf16.msra.mxu0 %v444
      %468 = vmatmul.bf16.gmra.mxu0 %v391
      %v469 = vpop.f32.mrf.mxu0
      %v470 = vadd.f32 %v410, %v469
      %v471 = vpop.f32.mrf.mxu0
      %472 = vdwg.mxu0
      %v473 = vadd.f32 %v274, %v470
      %474 = vst [vmem:[%s273] sm:$0xff] %v473
      %p475 = scmp.lt.s32.totalorder %s18, 1
      %s476 = scalar_select %p475, %s18, 1
      %s477 = smul.addr %s476, 8
      %s478 = scalar_lea.vmem %s7, %s477
      // Predicated region
      $region49: #{transition_pallas.1} parent=47 // pred_check
        %p479 = pneg %p188
      $region50: #{transition_pallas.1} parent=47 // pred_check_branch
        %481 = sbr.rel (%p479) target = $region52
      $region51: #{transition_pallas.1} parent=47 // pred_region
        _
      $region52: #{transition_pallas.1} parent=47 // pred_fallthru
        _
    $region48: #{transition_pallas.1} parent=5 // pred_fallthru
      _
    %p482 = scmp.le.s32.totalorder 2, %s13
    // Predicated region
    $region53: #{transition_pallas.1} parent=5 // pred_check
      %p483 = pneg %p482
    $region54: #{transition_pallas.1} parent=5 // pred_check_branch
      %485 = sbr.rel (%p483) target = $region56
    $region55: #{transition_pallas.1} parent=5 // pred_region
      %s486 = ssub.s32 %s13, 2
      // Predicated region
      $region57: #{transition_pallas.1} parent=55 // pred_check
        %p487 = pneg %p194
      $region58: #{transition_pallas.1} parent=55 // pred_check_branch
        %489 = sbr.rel (%p487) target = $region60
      $region59: #{transition_pallas.1} parent=55 // pred_region
        %p490 = scmp.lt.s32.totalorder %s19, 1
        %s491 = scalar_select %p490, %s19, 1
        %s492 = smul.addr %s491, 8
        %s493 = scalar_lea.vmem %s7, %s492
      $region60: #{transition_pallas.1} parent=55 // pred_fallthru
        _
    $region56: #{transition_pallas.1} parent=5 // pred_fallthru
      _
  $region6: #{transition_pallas.1} parent=0 // loop_footer
    %s17 = sadd.s32 1, %s13
  $region7: #{transition_pallas.1} parent=0 // loop_footer_branch
    %12 = sbr.rel target = $region3
  $region8: #{transition_pallas.1} parent=0 // loop_exit
    _

</llo_original>
